<compile_context>
chip_gen: v5e
topology: v5e:2x2
jax: 0.10.0
libtpu: 0.0.40
codegen_flags: <defaults>
</compile_context>

<pallas_src>
import jax
import jax.numpy as jnp
from jax import lax
from jax.experimental import pallas as pl
from jax.experimental.pallas import tpu as pltpu


def _round_up(x, m):
    return ((x + m - 1) // m) * m


# ----------------------------------------------------------------------------
# Pallas kernel: one batch-block of NB samples, fused normalize + grams + sum
# ----------------------------------------------------------------------------
def _nst_kernel(s_ref, t_ref, o_ref):
    # s_ref / t_ref: [NB, Cp, Mp] f32 (zero-padded channels / spatial).

    def _normalize(x):
        # F.normalize(dim=-1): x / max(||x||, 1e-12) == x * rsqrt(max(ss, 1e-24))
        ss = jnp.sum(x * x, axis=-1, keepdims=True)
        return x * lax.rsqrt(jnp.maximum(ss, jnp.float32(1e-24)))

    sb = _normalize(s_ref[...]).astype(jnp.bfloat16)
    tb = _normalize(t_ref[...]).astype(jnp.bfloat16)

    def _gram(a, b):
        # [NB, Cp, Mp] x [NB, Cp, Mp] -> [NB, Cp, Cp], contract over M, f32 acc.
        return lax.dot_general(a, b, (((2,), (2,)), ((0,), (0,))),
                               preferred_element_type=jnp.float32)

    g_ss = _gram(sb, sb)
    g_tt = _gram(tb, tb)
    g_st = _gram(sb, tb)

    val = (jnp.sum(g_ss * g_ss) + jnp.sum(g_tt * g_tt)
           - 2.0 * jnp.sum(g_st * g_st))

    # One unmasked full-vreg store per step; wrapper reads element [b, 0, 0].
    o_ref[...] = jnp.zeros(o_ref.shape, jnp.float32) + val


# ----------------------------------------------------------------------------
# Wrapper == NST.forward(fm_s, fm_t) for NCHW (or any [N, C, ...]) inputs
# ----------------------------------------------------------------------------
@jax.jit
def nst_loss(fm_s, fm_t):
    N, C = fm_s.shape[0], fm_s.shape[1]
    s = fm_s.reshape(N, C, -1).astype(jnp.float32)
    t = fm_t.reshape(N, C, -1).astype(jnp.float32)
    M = s.shape[-1]

    Cp = _round_up(C, 8)      # sublane-dense channels
    Mp = _round_up(M, 128)    # lane-dense contraction dim

    # Zero padding is mathematically inert for norms and grams.
    s = jnp.pad(s, ((0, 0), (0, Cp - C), (0, Mp - M)))
    t = jnp.pad(t, ((0, 0), (0, Cp - C), (0, Mp - M)))

    # Samples per grid step: target ~2 MiB per input block (stays well under
    # the 32 MiB VMEM budget with double buffering + bf16 copies), but keep
    # >=2 grid steps when possible so both v7x TensorCores get work.
    per_sample_bytes = Cp * Mp * 4
    nb = max(1, (2 * 1024 * 1024) // per_sample_bytes)
    if N >= 2:
        nb = min(nb, (N + 1) // 2)
    nb = min(nb, N)
    Np = _round_up(N, nb)
    nblk = Np // nb
    if Np != N:
        # Zero samples: zero rows -> zero grams -> contribute 0 to the sum.
        s = jnp.pad(s, ((0, Np - N), (0, 0), (0, 0)))
        t = jnp.pad(t, ((0, Np - N), (0, 0), (0, 0)))
    # TODO(synk): for very large C*M (a single sample exceeding a few MiB) the
    # contraction axis M should get its own 'arbitrary' grid axis with a VMEM
    # gram accumulator; unnecessary at these sizes.

    partials = pl.pallas_call(
        _nst_kernel,
        out_shape=jax.ShapeDtypeStruct((nblk, 8, 128), jnp.float32),
        grid_spec=pltpu.PrefetchScalarGridSpec(
            num_scalar_prefetch=0,
            grid=(nblk,),
            in_specs=[pl.BlockSpec((nb, Cp, Mp), lambda b: (b, 0, 0)),
                      pl.BlockSpec((nb, Cp, Mp), lambda b: (b, 0, 0))],
            out_specs=pl.BlockSpec((1, 8, 128), lambda b: (b, 0, 0)),
        ),
        compiler_params=pltpu.CompilerParams(
            dimension_semantics=("parallel",),
            vmem_limit_bytes=32 * 1024 * 1024),
    )(s, t)

    total = jnp.sum(partials[:, 0, 0])
    # .mean() over the [N, C, C] poly tensors uses the ORIGINAL sizes.
    return total / jnp.float32(N * C * C)


# ----------------------------------------------------------------------------
# Pure-JAX reference (mirrors the PyTorch module exactly, f32 everywhere)
# ----------------------------------------------------------------------------
def nst_reference(fm_s, fm_t):
    N, C = fm_s.shape[0], fm_s.shape[1]
    s = fm_s.reshape(N, C, -1).astype(jnp.float32)
    t = fm_t.reshape(N, C, -1).astype(jnp.float32)

    def _norm(x):
        n = jnp.sqrt(jnp.sum(x * x, axis=-1, keepdims=True))
        return x / jnp.maximum(n, 1e-12)

    s, t = _norm(s), _norm(t)

    def poly(a, b):
        return jnp.einsum('nim,njm->nij', a, b) ** 2

    return poly(t, t).mean() + poly(s, s).mean() - 2.0 * poly(s, t).mean()


# ----------------------------------------------------------------------------
if __name__ == "__main__":
    key = jax.random.PRNGKey(0)
    k1, k2, k3, k4 = jax.random.split(key, 4)

    def _check(loss, ref):
        return bool(jnp.isfinite(loss)) and (
            abs(float(loss) - float(ref)) <= 5e-2 * max(abs(float(ref)), 1e-3))

    # Small NCHW features consistent with the module's forward.
    B, C, H, W = 2, 4, 16, 16
    fm_s = jax.random.normal(k1, (B, C, H, W), dtype=jnp.float32)
    fm_t = jax.random.normal(k2, (B, C, H, W), dtype=jnp.float32)
    loss1 = jax.block_until_ready(nst_loss(fm_s, fm_t))
    ref1 = jax.block_until_ready(nst_reference(fm_s, fm_t))
    ok1 = _check(loss1, ref1)

    # Unaligned channels / spatial — exercises the (8,128) padding path.
    fm_s2 = jax.random.normal(k3, (3, 5, 7, 9), dtype=jnp.float32)
    fm_t2 = jax.random.normal(k4, (3, 5, 7, 9), dtype=jnp.float32)
    loss2 = jax.block_until_ready(nst_loss(fm_s2, fm_t2))
    ref2 = jax.block_until_ready(nst_reference(fm_s2, fm_t2))
    ok2 = _check(loss2, ref2)

    if ok1 and ok2:
        print("KERNEL_OK")
    else:
        print(f"MISMATCH loss1={float(loss1)} ref1={float(ref1)} "
              f"loss2={float(loss2)} ref2={float(ref2)}")
</pallas_src>

<mosaic_0001>
module attributes {stable_mosaic.version = 11 : i64} {
  func.func @_nst_kernel(%arg0: i32, %arg1: memref<1x8x256xf32, #tpu.memory_space<vmem>>, %arg2: memref<1x8x256xf32, #tpu.memory_space<vmem>>, %arg3: memref<1x8x128xf32, #tpu.memory_space<vmem>>) attributes {dimension_semantics = [#tpu.dimension_semantics<parallel>], iteration_bounds = array<i64: 2>, scalar_prefetch = 0 : i64, scratch_operands = 0 : i64, tpu.core_type = #tpu.core_type<tc>, window_params = [{transform_indices = @transform_0, window_bounds = array<i64: 1, 8, 256>}, {transform_indices = @transform_1, window_bounds = array<i64: 1, 8, 256>}, {transform_indices = @transform_2, window_bounds = array<i64: 1, 8, 128>}]} {
    %c0 = arith.constant 0 : index
    %c0_0 = arith.constant 0 : index
    %c0_1 = arith.constant 0 : index
    %0 = vector.load %arg1[%c0, %c0_0, %c0_1] : memref<1x8x256xf32, #tpu.memory_space<vmem>>, vector<1x8x256xf32>
    %1 = arith.mulf %0, %0 : vector<1x8x256xf32>
    %cst = arith.constant dense<0.000000e+00> : vector<1x8xf32>
    %2 = vector.multi_reduction <add>, %1, %cst [2] : vector<1x8x256xf32> to vector<1x8xf32>
    %3 = vector.shape_cast %2 : vector<1x8xf32> to vector<1x8x1xf32>
    %cst_2 = arith.constant 1.000000e-24 : f32
    %4 = vector.broadcast %cst_2 : f32 to vector<1x8x1xf32>
    %5 = arith.maximumf %3, %4 : vector<1x8x1xf32>
    %6 = math.rsqrt %5 : vector<1x8x1xf32>
    %7 = vector.broadcast %6 : vector<1x8x1xf32> to vector<1x8x256xf32>
    %8 = arith.mulf %0, %7 : vector<1x8x256xf32>
    %9 = arith.truncf %8 : vector<1x8x256xf32> to vector<1x8x256xbf16>
    %c0_3 = arith.constant 0 : index
    %c0_4 = arith.constant 0 : index
    %c0_5 = arith.constant 0 : index
    %10 = vector.load %arg2[%c0_3, %c0_4, %c0_5] : memref<1x8x256xf32, #tpu.memory_space<vmem>>, vector<1x8x256xf32>
    %11 = arith.mulf %10, %10 : vector<1x8x256xf32>
    %cst_6 = arith.constant dense<0.000000e+00> : vector<1x8xf32>
    %12 = vector.multi_reduction <add>, %11, %cst_6 [2] : vector<1x8x256xf32> to vector<1x8xf32>
    %13 = vector.shape_cast %12 : vector<1x8xf32> to vector<1x8x1xf32>
    %cst_7 = arith.constant 1.000000e-24 : f32
    %14 = vector.broadcast %cst_7 : f32 to vector<1x8x1xf32>
    %15 = arith.maximumf %13, %14 : vector<1x8x1xf32>
    %16 = math.rsqrt %15 : vector<1x8x1xf32>
    %17 = vector.broadcast %16 : vector<1x8x1xf32> to vector<1x8x256xf32>
    %18 = arith.mulf %10, %17 : vector<1x8x256xf32>
    %19 = arith.truncf %18 : vector<1x8x256xf32> to vector<1x8x256xbf16>
    %cst_8 = arith.constant dense<0.000000e+00> : vector<1x8x8xf32>
    %20 = tpu.matmul %9, %9, %cst_8 {dimension_numbers = #tpu.dot_dimension_numbers<[2], [2], [1], [1], [0, 0, 0, 1, 1, 1], [0], [0]>} : vector<1x8x256xbf16>, vector<1x8x256xbf16>, vector<1x8x8xf32> -> vector<1x8x8xf32>
    %cst_9 = arith.constant dense<0.000000e+00> : vector<1x8x8xf32>
    %21 = tpu.matmul %19, %19, %cst_9 {dimension_numbers = #tpu.dot_dimension_numbers<[2], [2], [1], [1], [0, 0, 0, 1, 1, 1], [0], [0]>} : vector<1x8x256xbf16>, vector<1x8x256xbf16>, vector<1x8x8xf32> -> vector<1x8x8xf32>
    %cst_10 = arith.constant dense<0.000000e+00> : vector<1x8x8xf32>
    %22 = tpu.matmul %9, %19, %cst_10 {dimension_numbers = #tpu.dot_dimension_numbers<[2], [2], [1], [1], [0, 0, 0, 1, 1, 1], [0], [0]>} : vector<1x8x256xbf16>, vector<1x8x256xbf16>, vector<1x8x8xf32> -> vector<1x8x8xf32>
    %23 = arith.mulf %20, %20 : vector<1x8x8xf32>
    %24 = vector.shape_cast %23 : vector<1x8x8xf32> to vector<1x1x8x8xf32>
    %cst_11 = arith.constant dense<0.000000e+00> : vector<1xf32>
    %25 = vector.multi_reduction <add>, %24, %cst_11 [1, 2, 3] : vector<1x1x8x8xf32> to vector<1xf32>
    %26 = vector.shape_cast %25 : vector<1xf32> to vector<1x1x1x1xf32>
    %27 = vector.extract %26[0, 0, 0, 0] : f32 from vector<1x1x1x1xf32>
    %28 = arith.mulf %21, %21 : vector<1x8x8xf32>
    %29 = vector.shape_cast %28 : vector<1x8x8xf32> to vector<1x1x8x8xf32>
    %cst_12 = arith.constant dense<0.000000e+00> : vector<1xf32>
    %30 = vector.multi_reduction <add>, %29, %cst_12 [1, 2, 3] : vector<1x1x8x8xf32> to vector<1xf32>
    %31 = vector.shape_cast %30 : vector<1xf32> to vector<1x1x1x1xf32>
    %32 = vector.extract %31[0, 0, 0, 0] : f32 from vector<1x1x1x1xf32>
    %33 = arith.addf %27, %32 : f32
    %34 = arith.mulf %22, %22 : vector<1x8x8xf32>
    %35 = vector.shape_cast %34 : vector<1x8x8xf32> to vector<1x1x8x8xf32>
    %cst_13 = arith.constant dense<0.000000e+00> : vector<1xf32>
    %36 = vector.multi_reduction <add>, %35, %cst_13 [1, 2, 3] : vector<1x1x8x8xf32> to vector<1xf32>
    %37 = vector.shape_cast %36 : vector<1xf32> to vector<1x1x1x1xf32>
    %38 = vector.extract %37[0, 0, 0, 0] : f32 from vector<1x1x1x1xf32>
    %cst_14 = arith.constant 2.000000e+00 : f32
    %39 = arith.mulf %cst_14, %38 : f32
    %40 = arith.subf %33, %39 : f32
    %cst_15 = arith.constant 0.000000e+00 : f32
    %41 = vector.broadcast %cst_15 : f32 to vector<1x8x128xf32>
    %42 = vector.broadcast %40 : f32 to vector<1x8x128xf32>
    %43 = arith.addf %41, %42 : vector<1x8x128xf32>
    %c0_16 = arith.constant 0 : index
    %c0_17 = arith.constant 0 : index
    %c0_18 = arith.constant 0 : index
    %44 = vector.load %arg3[%c0_16, %c0_17, %c0_18] : memref<1x8x128xf32, #tpu.memory_space<vmem>>, vector<1x8x128xf32>
    tpu.vector_store %arg3[%c0_16, %c0_17, %c0_18], %43 {strides = array<i32>} : memref<1x8x128xf32, #tpu.memory_space<vmem>>, vector<1x8x128xf32>,
    return
  }
  func.func @transform_0(%arg0: i32) -> (i32, i32, i32) {
    %c0_i32 = arith.constant 0 : i32
    %c0_i32_0 = arith.constant 0 : i32
    %c0_i32_1 = arith.constant 0 : i32
    return %arg0, %c0_i32, %c0_i32_0 : i32, i32, i32
  }
  func.func @transform_1(%arg0: i32) -> (i32, i32, i32) {
    %c0_i32 = arith.constant 0 : i32
    %c0_i32_0 = arith.constant 0 : i32
    %c0_i32_1 = arith.constant 0 : i32
    return %arg0, %c0_i32, %c0_i32_0 : i32, i32, i32
  }
  func.func @transform_2(%arg0: i32) -> (i32, i32, i32) {
    %c0_i32 = arith.constant 0 : i32
    %c0_i32_0 = arith.constant 0 : i32
    %c0_i32_1 = arith.constant 0 : i32
    return %arg0, %c0_i32, %c0_i32_0 : i32, i32, i32
  }
}

</mosaic_0001>

<llo_original>
// kernel: nst_loss.1
$region0: #{nst_loss.1}
  #allocation0 [shape = 'u32[]', space=smem, size = 0x4, offset = 0x4, fixed_abs, tag = 'smem constant byte address 0x4 - core index']
  #allocation1 [shape = 'u32[72,128]{1,0:T(1,128)}', space=vmem, size = 0x9000, scoped, tag = 'internal scratch']
  %s0 = inlined_call_operand.vmem [shape: f32[2,8,256], index: 0, kind: input, shape index: {}]
  %s1 = inlined_call_operand.vmem [shape: f32[2,8,256], index: 1, kind: input, shape index: {}]
  %s2 = inlined_call_operand.vmem [shape: f32[2,8,128], index: 2, kind: output, shape index: {}]
  %s3 = sld [smem:[#allocation0]]
  $region41: #{nst_loss.1} parent=0
    _
  %s5 = ssub.s32 1, %s3
  %s6 = scalar_select 0, %s5, %s3
  loop: start=0, step=1, limit=4
  $region2: #{nst_loss.1} parent=0 // loop_pre_header
    _
  $region3: #{nst_loss.1} parent=0 // loop_header
    %s8 = sphi 0, %s12
    %p9 = scmp.ge.s32.totalorder %s8, 4
    %s18 = sphi 0, %s20
    %s21 = sphi 0, %s18
    %s22 = sphi 0, %s21
    %s38 = sphi 0, %s22
    %s44 = sphi 0, %s46
    %s47 = sphi 0, %s44
    %s48 = sphi 0, %s47
    %s64 = sphi 0, %s48
    %s70 = sphi 0, %s72
    %s73 = sphi 0, %s70
    %s74 = sphi 0, %s73
    %s90 = sphi 0, %s74
  $region4: #{nst_loss.1} parent=0 // loop_header_branch
    %11 = sbr.rel (%p9) target = $region8
  $region5: #{nst_loss.1} parent=0 // loop_body
    %s13 = ssub.s32 %s8, 1
    %s14 = ssub.s32 %s8, 2
    %s15 = sadd.s32 %s8, 1
    %s16 = ssub.s32 %s8, %s15
    %p17 = scmp.eq.s32.totalorder %s16, 0
    %s19 = sadd.s32 %s18, 1
    %s20 = scalar_select %p17, %s18, %s19
    %p23 = pneg %p17
    %p24 = scmp.eq.s32.totalorder %s8, 1
    %p25 = por %p23, %p24
    %p26 = scmp.ne.s32.totalorder %s18, %s21
    %p27 = scmp.eq.s32.totalorder %s8, 0
    %p28 = por %p26, %p27
    %p29 = scmp.ne.s32.totalorder %s18, %s21
    %p30 = scmp.eq.s32.totalorder %s13, 1
    %p31 = por %p29, %p30
    %p32 = scmp.ne.s32.totalorder %s21, %s22
    %p33 = scmp.eq.s32.totalorder %s13, 0
    %p34 = por %p32, %p33
    %p35 = scmp.ne.s32.totalorder %s21, %s22
    %p36 = scmp.eq.s32.totalorder %s14, 1
    %p37 = por %p35, %p36
    %p39 = scmp.ne.s32.totalorder %s22, %s38
    %p40 = scmp.eq.s32.totalorder %s14, 0
    %p41 = por %p39, %p40
    %s42 = ssub.s32 %s8, %s15
    %p43 = scmp.eq.s32.totalorder %s42, 0
    %s45 = sadd.s32 %s44, 1
    %s46 = scalar_select %p43, %s44, %s45
    %p49 = pneg %p43
    %p50 = scmp.eq.s32.totalorder %s8, 1
    %p51 = por %p49, %p50
    %p52 = scmp.ne.s32.totalorder %s44, %s47
    %p53 = scmp.eq.s32.totalorder %s8, 0
    %p54 = por %p52, %p53
    %p55 = scmp.ne.s32.totalorder %s44, %s47
    %p56 = scmp.eq.s32.totalorder %s13, 1
    %p57 = por %p55, %p56
    %p58 = scmp.ne.s32.totalorder %s47, %s48
    %p59 = scmp.eq.s32.totalorder %s13, 0
    %p60 = por %p58, %p59
    %p61 = scmp.ne.s32.totalorder %s47, %s48
    %p62 = scmp.eq.s32.totalorder %s14, 1
    %p63 = por %p61, %p62
    %p65 = scmp.ne.s32.totalorder %s48, %s64
    %p66 = scmp.eq.s32.totalorder %s14, 0
    %p67 = por %p65, %p66
    %s68 = ssub.s32 %s8, %s15
    %p69 = scmp.eq.s32.totalorder %s68, 0
    %s71 = sadd.s32 %s70, 1
    %s72 = scalar_select %p69, %s70, %s71
    %p75 = pneg %p69
    %p76 = scmp.eq.s32.totalorder %s8, 1
    %p77 = por %p75, %p76
    %p78 = scmp.ne.s32.totalorder %s70, %s73
    %p79 = scmp.eq.s32.totalorder %s8, 0
    %p80 = por %p78, %p79
    %p81 = scmp.ne.s32.totalorder %s70, %s73
    %p82 = scmp.eq.s32.totalorder %s13, 1
    %p83 = por %p81, %p82
    %p84 = scmp.ne.s32.totalorder %s73, %s74
    %p85 = scmp.eq.s32.totalorder %s13, 0
    %p86 = por %p84, %p85
    %p87 = scmp.ne.s32.totalorder %s73, %s74
    %p88 = scmp.eq.s32.totalorder %s14, 1
    %p89 = por %p87, %p88
    %p91 = scmp.ne.s32.totalorder %s74, %s90
    %p92 = scmp.eq.s32.totalorder %s14, 0
    %p93 = por %p91, %p92
    %p94 = scmp.le.s32.totalorder 1, %s8
    %p95 = scmp.lt.s32.totalorder %s8, 3
    %p96 = pnand %p94, %p95
    %p97 = pneg %p96
    // Predicated region
    $region9: #{nst_loss.1} parent=5 // pred_check
      _
    $region10: #{nst_loss.1} parent=5 // pred_check_branch
      %99 = sbr.rel (%p96) target = $region12
    $region11: #{nst_loss.1} parent=5 // pred_region
      %s100 = ssub.s32 %s8, 1
    $region12: #{nst_loss.1} parent=5 // pred_fallthru
      _
    %p101 = scmp.lt.s32.totalorder %s8, 2
    // Predicated region
    $region13: #{nst_loss.1} parent=5 // pred_check
      %p102 = pneg %p101
    $region14: #{nst_loss.1} parent=5 // pred_check_branch
      %104 = sbr.rel (%p102) target = $region16
    $region15: #{nst_loss.1} parent=5 // pred_region
      // Predicated region
      $region17: #{nst_loss.1} parent=15 // pred_check
        %p105 = pneg %p28
      $region18: #{nst_loss.1} parent=15 // pred_check_branch
        %107 = sbr.rel (%p105) target = $region20
      $region19: #{nst_loss.1} parent=15 // pred_region
        %p108 = scmp.lt.s32.totalorder %s8, 1
        %s109 = scalar_select %p108, %s8, 1
        %s110 = smul.addr %s109, 2
        %s111 = smul.addr %s110, 8
        %s112 = scalar_lea.vmem %s0, %s111
      $region20: #{nst_loss.1} parent=15 // pred_fallthru
        _
      // Predicated region
      $region21: #{nst_loss.1} parent=15 // pred_check
        %p113 = pneg %p54
      $region22: #{nst_loss.1} parent=15 // pred_check_branch
        %115 = sbr.rel (%p113) target = $region24
      $region23: #{nst_loss.1} parent=15 // pred_region
        %p116 = scmp.lt.s32.totalorder %s8, 1
        %s117 = scalar_select %p116, %s8, 1
        %s118 = smul.addr %s117, 2
        %s119 = smul.addr %s118, 8
        %s120 = scalar_lea.vmem %s1, %s119
      $region24: #{nst_loss.1} parent=15 // pred_fallthru
        _
    $region16: #{nst_loss.1} parent=5 // pred_fallthru
      _
    %p121 = scmp.le.s32.totalorder 1, %s8
    %p122 = scmp.lt.s32.totalorder %s8, 3
    %p123 = pnand %p121, %p122
    %p124 = pneg %p123
    // Predicated region
    $region25: #{nst_loss.1} parent=5 // pred_check
      _
    $region26: #{nst_loss.1} parent=5 // pred_check_branch
      %126 = sbr.rel (%p123) target = $region28
    $region27: #{nst_loss.1} parent=5 // pred_region
      %s127 = ssub.s32 %s8, 1
      %p128 = scmp.lt.s32.totalorder %s13, 1
      %s129 = scalar_select %p128, %s13, 1
      %s130 = smul.addr %s129, 2
      %s131 = smul.addr %s130, 8
      %s132 = scalar_lea.vmem %s0, %s131
      %p133 = pneg %p34
      %p134 = pneg %p31
      %p135 = scmp.lt.s32.totalorder %s13, 1
      %s136 = scalar_select %p135, %s13, 1
      %s137 = smul.addr %s136, 2
      %s138 = smul.addr %s137, 8
      %s139 = scalar_lea.vmem %s1, %s138
      %p140 = pneg %p60
      %p141 = pneg %p57
      %p142 = pneg %p86
      %p143 = pneg %p83
      %p144 = scmp.lt.s32.totalorder %s13, 1
      %s145 = scalar_select %p144, %s13, 1
      %s146 = smul.addr %s145, 8
      %s147 = scalar_lea.vmem %s2, %s146
      %p148 = scmp.lt.s32.totalorder %s13, 1
      %s149 = scalar_select %p148, %s13, 1
      %s150 = smul.addr %s149, 2
      %s151 = smul.addr %s150, 8
      %s152 = scalar_lea.vmem %s0, %s151
      %p153 = scmp.lt.s32.totalorder %s13, 1
      %s154 = scalar_select %p153, %s13, 1
      %s155 = smul.addr %s154, 2
      %s156 = smul.addr %s155, 8
      %s157 = scalar_lea.vmem %s1, %s156
      %p158 = scmp.lt.s32.totalorder %s13, 1
      %s159 = scalar_select %p158, %s13, 1
      %s160 = smul.addr %s159, 8
      %s161 = scalar_lea.vmem %s2, %s160
      %v163 = vld [vmem:[%s152] sm:$0xff]
      %v164 = vld [vmem:[%s152 + $0x8] sm:$0xff]
      %v165 = vmul.f32 %v163, %v163
      %v166 = vmul.f32 %v164, %v164
      %v167 = vadd.f32 %v165, %v166
      %168 = vadd.xlane.f32.xlu0 %v167
      %v169 = vpop.xlane.xlu0 %168
      %v170 = vmax.f32 %v169, 1e-24
      %v171 = vrsqrt.pop %v170
      %v172 = vmul.f32 %v171, %v170
      %v173 = vmul.f32 %v172, %v171
      %v174 = vmul.f32 0.5, %v173
      %v175 = vsub.f32 1.5, %v174
      %v176 = vmul.f32 %v171, %v175
      %vm177 = vweird.f32 %v170
      %vm178 = vweird.f32 %v171
      %vm179 = vmor %vm177, %vm178
      %v180 = vsel %vm179, %v171, %v176
      %v181 = vmul.f32 %v163, %v180
      %v182 = vmul.f32 %v164, %v180
      %v183 = vpack.c.bf16 %v182, %v181
      %v184 = vld [vmem:[%s157] sm:$0xff]
      %v185 = vld [vmem:[%s157 + $0x8] sm:$0xff]
      %v186 = vmul.f32 %v184, %v184
      %v187 = vmul.f32 %v185, %v185
      %v188 = vadd.f32 %v186, %v187
      %189 = vadd.xlane.f32.xlu0 %v188
      %v190 = vpop.xlane.xlu0 %189
      %v191 = vmax.f32 %v190, 1e-24
      %v192 = vrsqrt.pop %v191
      %v193 = vmul.f32 %v192, %v191
      %v194 = vmul.f32 %v193, %v192
      %v195 = vmul.f32 0.5, %v194
      %v196 = vsub.f32 1.5, %v195
      %v197 = vmul.f32 %v192, %v196
      %vm198 = vweird.f32 %v191
      %vm199 = vweird.f32 %v192
      %vm200 = vmor %vm198, %vm199
      %v201 = vsel %vm200, %v192, %v197
      %v202 = vmul.f32 %v184, %v201
      %v203 = vmul.f32 %v185, %v201
      %v204 = vpack.c.bf16 %v203, %v202
      %v206 = vunpack.c.l.b16 %v183
      %v207 = vunpack.c.h.b16 %v183
      %v208 = vpack.c.b16 %v206, %v206
      %v209 = vpack.c.b16 %v207, %v207
      %212 = vmatpush.bf16.xpose.msra.mxu0 0
      %213 = vmatpush.bf16.xpose.msra.mxu0 0
      %214 = vmatpush.bf16.xpose.msra.mxu0 0
      %215 = vmatpush.bf16.xpose.msra.mxu0 0
      %216 = vmatpush.bf16.xpose.msra.mxu0 0
      %217 = vmatpush.bf16.xpose.msra.mxu0 0
      %218 = vmatpush.bf16.xpose.msra.mxu0 0
      %219 = vmatpush.bf16.xpose.msra.mxu0 %v208
      %220 = vmatmul.bf16.gmra.mxu0 %v208
      %v221 = vpop.f32.mrf.mxu0
      %v222 = vadd.f32 0.0, %v221
      %v223 = vpop.f32.mrf.mxu0
      %224 = vdwg.mxu0
      %225 = vmatpush.bf16.xpose.msra.mxu0 0
      %226 = vmatpush.bf16.xpose.msra.mxu0 0
      %227 = vmatpush.bf16.xpose.msra.mxu0 0
      %228 = vmatpush.bf16.xpose.msra.mxu0 0
      %229 = vmatpush.bf16.xpose.msra.mxu0 0
      %230 = vmatpush.bf16.xpose.msra.mxu0 0
      %231 = vmatpush.bf16.xpose.msra.mxu0 0
      %232 = vmatpush.bf16.xpose.msra.mxu0 %v209
      %233 = vmatmul.bf16.gmra.mxu0 %v209
      %v234 = vpop.f32.mrf.mxu0
      %v235 = vadd.f32 %v222, %v234
      %v236 = vpop.f32.mrf.mxu0
      %237 = vdwg.mxu0
      %v239 = vunpack.c.l.b16 %v204
      %v240 = vunpack.c.h.b16 %v204
      %v241 = vpack.c.b16 %v239, %v239
      %v242 = vpack.c.b16 %v240, %v240
      %245 = vmatpush.bf16.xpose.msra.mxu0 0
      %246 = vmatpush.bf16.xpose.msra.mxu0 0
      %247 = vmatpush.bf16.xpose.msra.mxu0 0
      %248 = vmatpush.bf16.xpose.msra.mxu0 0
      %249 = vmatpush.bf16.xpose.msra.mxu0 0
      %250 = vmatpush.bf16.xpose.msra.mxu0 0
      %251 = vmatpush.bf16.xpose.msra.mxu0 0
      %252 = vmatpush.bf16.xpose.msra.mxu0 %v241
      %253 = vmatmul.bf16.gmra.mxu0 %v241
      %v254 = vpop.f32.mrf.mxu0
      %v255 = vadd.f32 0.0, %v254
      %v256 = vpop.f32.mrf.mxu0
      %257 = vdwg.mxu0
      %258 = vmatpush.bf16.xpose.msra.mxu0 0
      %259 = vmatpush.bf16.xpose.msra.mxu0 0
      %260 = vmatpush.bf16.xpose.msra.mxu0 0
      %261 = vmatpush.bf16.xpose.msra.mxu0 0
      %262 = vmatpush.bf16.xpose.msra.mxu0 0
      %263 = vmatpush.bf16.xpose.msra.mxu0 0
      %264 = vmatpush.bf16.xpose.msra.mxu0 0
      %265 = vmatpush.bf16.xpose.msra.mxu0 %v242
      %266 = vmatmul.bf16.gmra.mxu0 %v242
      %v267 = vpop.f32.mrf.mxu0
      %v268 = vadd.f32 %v255, %v267
      %v269 = vpop.f32.mrf.mxu0
      %270 = vdwg.mxu0
      %271 = vmatpush.bf16.xpose.msra.mxu0 0
      %272 = vmatpush.bf16.xpose.msra.mxu0 0
      %273 = vmatpush.bf16.xpose.msra.mxu0 0
      %274 = vmatpush.bf16.xpose.msra.mxu0 0
      %275 = vmatpush.bf16.xpose.msra.mxu0 0
      %276 = vmatpush.bf16.xpose.msra.mxu0 0
      %277 = vmatpush.bf16.xpose.msra.mxu0 0
      %278 = vmatpush.bf16.xpose.msra.mxu0 %v241
      %279 = vmatmul.bf16.gmra.mxu0 %v208
      %v280 = vpop.f32.mrf.mxu0
      %v281 = vadd.f32 0.0, %v280
      %v282 = vpop.f32.mrf.mxu0
      %283 = vdwg.mxu0
      %284 = vmatpush.bf16.xpose.msra.mxu0 0
      %285 = vmatpush.bf16.xpose.msra.mxu0 0
      %286 = vmatpush.bf16.xpose.msra.mxu0 0
      %287 = vmatpush.bf16.xpose.msra.mxu0 0
      %288 = vmatpush.bf16.xpose.msra.mxu0 0
      %289 = vmatpush.bf16.xpose.msra.mxu0 0
      %290 = vmatpush.bf16.xpose.msra.mxu0 0
      %291 = vmatpush.bf16.xpose.msra.mxu0 %v242
      %292 = vmatmul.bf16.gmra.mxu0 %v209
      %v293 = vpop.f32.mrf.mxu0
      %v294 = vadd.f32 %v281, %v293
      %v295 = vpop.f32.mrf.mxu0
      %296 = vdwg.mxu0
      %v297 = vmul.f32 %v235, %v235
      %vm298 = vcmask 64512
      %v299 = vsel %vm298, %v297, 0.0
      %300 = vadd.xlane.f32.xlu0 %v299
      %v301 = vpop.xlane.xlu0 %300
      %v302 = vrot.slane %v301, 4
      %v303 = vadd.f32 %v301, %v302
      %v304 = vrot.slane %v303, 2
      %v305 = vadd.f32 %v303, %v304
      %v306 = vrot.slane %v305, 1
      %v307 = vadd.f32 %v305, %v306
      %s308 = vtos %v307
      %v309 = vmul.f32 %v268, %v268
      %v310 = vsel %vm298, %v309, 0.0
      %311 = vadd.xlane.f32.xlu0 %v310
      %v312 = vpop.xlane.xlu0 %311
      %v313 = vrot.slane %v312, 4
      %v314 = vadd.f32 %v312, %v313
      %v315 = vrot.slane %v314, 2
      %v316 = vadd.f32 %v314, %v315
      %v317 = vrot.slane %v316, 1
      %v318 = vadd.f32 %v316, %v317
      %s319 = vtos %v318
      %s320 = sadd.f32 %s308, %s319
      %v321 = vmul.f32 %v294, %v294
      %v322 = vsel %vm298, %v321, 0.0
      %323 = vadd.xlane.f32.xlu0 %v322
      %v324 = vpop.xlane.xlu0 %323
      %v325 = vrot.slane %v324, 4
      %v326 = vadd.f32 %v324, %v325
      %v327 = vrot.slane %v326, 2
      %v328 = vadd.f32 %v326, %v327
      %v329 = vrot.slane %v328, 1
      %v330 = vadd.f32 %v328, %v329
      %s331 = vtos %v330
      %s332 = smul.f32 %s331, 2.0
      %s333 = ssub.f32 %s320, %s332
      %v334 = vstv %s333
      %v335 = vadd.f32 %v334, 0.0
      %336 = vst [vmem:[%s161] sm:$0xff] %v335
      %p337 = scmp.lt.s32.totalorder %s13, 1
      %s338 = scalar_select %p337, %s13, 1
      %s339 = smul.addr %s338, 8
      %s340 = scalar_lea.vmem %s2, %s339
      // Predicated region
      $region29: #{nst_loss.1} parent=27 // pred_check
        %p341 = pneg %p83
      $region30: #{nst_loss.1} parent=27 // pred_check_branch
        %343 = sbr.rel (%p341) target = $region32
      $region31: #{nst_loss.1} parent=27 // pred_region
        _
      $region32: #{nst_loss.1} parent=27 // pred_fallthru
        _
    $region28: #{nst_loss.1} parent=5 // pred_fallthru
      _
    %p344 = scmp.le.s32.totalorder 2, %s8
    // Predicated region
    $region33: #{nst_loss.1} parent=5 // pred_check
      %p345 = pneg %p344
    $region34: #{nst_loss.1} parent=5 // pred_check_branch
      %347 = sbr.rel (%p345) target = $region36
    $region35: #{nst_loss.1} parent=5 // pred_region
      %s348 = ssub.s32 %s8, 2
      // Predicated region
      $region37: #{nst_loss.1} parent=35 // pred_check
        %p349 = pneg %p89
      $region38: #{nst_loss.1} parent=35 // pred_check_branch
        %351 = sbr.rel (%p349) target = $region40
      $region39: #{nst_loss.1} parent=35 // pred_region
        %p352 = scmp.lt.s32.totalorder %s14, 1
        %s353 = scalar_select %p352, %s14, 1
        %s354 = smul.addr %s353, 8
        %s355 = scalar_lea.vmem %s2, %s354
      $region40: #{nst_loss.1} parent=35 // pred_fallthru
        _
    $region36: #{nst_loss.1} parent=5 // pred_fallthru
      _
  $region6: #{nst_loss.1} parent=0 // loop_footer
    %s12 = sadd.s32 1, %s8
  $region7: #{nst_loss.1} parent=0 // loop_footer_branch
    %7 = sbr.rel target = $region3
  $region8: #{nst_loss.1} parent=0 // loop_exit
    _

</llo_original>
